<compile_context>
chip_gen: v6e
topology: v6e:2x2x1
jax: 0.10.0
libtpu: 0.0.40
codegen_flags: <defaults>
</compile_context>

<pallas_src>
import functools

import jax
import jax.numpy as jnp
from jax.experimental import pallas as pl
from jax.experimental.pallas import tpu as pltpu


def _round_up(x: int, m: int) -> int:
    return ((x + m - 1) // m) * m


def _factorized_ffn_kernel(x_ref, us_ref, v_ref, o_ref):
    # x_ref : (tm, d_model)  input dtype (e.g. f32), streamed straight from HBM
    # us_ref: (d_model, k_pad) bf16, resident across the whole grid
    # v_ref : (k_pad, tn)    bf16 column tile of V
    # o_ref : (tm, tn)
    x = x_ref[...].astype(us_ref.dtype)  # in-kernel cast (VPU, hidden under MXU)
    # The first matmul is recomputed per d_ff tile; with small rank k this is
    # negligible extra MXU work in a memory-bound kernel and keeps the kernel
    # stateless (safe under megacore sharding of either grid axis).
    xu = jnp.dot(x, us_ref[...], preferred_element_type=jnp.float32)
    # Intentional precision tradeoff: xu -> bf16 keeps the second matmul at
    # full bf16 MXU rate; keep xu in f32 here if downstream accuracy needs it.
    o_ref[...] = jnp.dot(xu.astype(v_ref.dtype), v_ref[...],
                         preferred_element_type=jnp.float32).astype(o_ref.dtype)


@functools.partial(jax.jit,
                   static_argnames=("tm", "tn", "compute_dtype", "out_dtype"))
def factorized_bert_intermediate(x, U, S, V, *, tm=512, tn=1024,
                                 compute_dtype=jnp.bfloat16, out_dtype=None):
    """x: [..., d_model] -> [..., d_ff]; semantics match the PyTorch module."""
    d_model, k = U.shape
    kv_dim, d_ff = V.shape
    assert kv_dim == k and S.shape == (k, k)

    lead_shape = x.shape[:-1]
    M = 1
    for d in lead_shape:
        M *= d

    out_dt = jnp.dtype(x.dtype if out_dtype is None else out_dtype)
    cdt = jnp.dtype(x.dtype if compute_dtype is None else compute_dtype)
    bs = lambda dt: jnp.dtype(dt).itemsize

    # Fold the constant k x k matrix S into U once, outside the kernel.
    US = jnp.dot(U.astype(jnp.float32), S.astype(jnp.float32)).astype(cdt)
    Vc = V.astype(cdt)

    # Zero-pad only the rank dim of the (tiny) weights to 128 lanes so the xu
    # intermediate is lane-dense.  Zero padding leaves the math unchanged.
    k_pad = _round_up(k, 128)
    if k_pad != k:
        US = jnp.pad(US, ((0, 0), (0, k_pad - k)))
        Vc = jnp.pad(Vc, ((0, k_pad - k), (0, 0)))

    # Activations are NOT padded or cast in the wrapper -- that would be extra
    # full HBM passes over x / the output.  Partial last blocks are masked.
    x2d = x.reshape(M, d_model)

    # Tile sizes: full extent for small dims (always legal), otherwise
    # (8, 128)-aligned tiles with cdiv grids and masked partial blocks.
    tm_al = _round_up(tm, 8)
    tm_eff = M if M <= tm_al else tm_al
    tn_al = _round_up(tn, 128)
    tn_eff = d_ff if d_ff <= tn_al else tn_al
    grid = (pl.cdiv(M, tm_eff), pl.cdiv(d_ff, tn_eff))

    # Explicit VMEM budget: double-buffered x / V / out tiles + resident US.
    vmem_bytes = (2 * tm_eff * d_model * bs(x2d.dtype)
                  + 2 * d_model * k_pad * bs(cdt)
                  + 2 * k_pad * tn_eff * bs(cdt)
                  + 2 * tm_eff * tn_eff * bs(out_dt))
    vmem_limit = int(min(max(vmem_bytes + (8 << 20), 32 << 20), 64 << 20))

    flops = 2 * M * d_model * k_pad + 2 * M * k_pad * d_ff
    bytes_accessed = (M * d_model * bs(x2d.dtype)
                      + d_model * k_pad * bs(cdt)
                      + k_pad * d_ff * bs(cdt)
                      + M * d_ff * bs(out_dt))

    out2d = pl.pallas_call(
        _factorized_ffn_kernel,
        out_shape=jax.ShapeDtypeStruct((M, d_ff), out_dt),
        grid_spec=pl.GridSpec(
            grid=grid,
            in_specs=[
                pl.BlockSpec((tm_eff, d_model), lambda i, j: (i, 0)),  # x rows (resident across j)
                pl.BlockSpec((d_model, k_pad), lambda i, j: (0, 0)),   # US (resident)
                pl.BlockSpec((k_pad, tn_eff), lambda i, j: (0, j)),    # V column tile
            ],
            out_specs=pl.BlockSpec((tm_eff, tn_eff), lambda i, j: (i, j)),
        ),
        compiler_params=pltpu.CompilerParams(
            dimension_semantics=("parallel", "parallel"),
            vmem_limit_bytes=vmem_limit),
        cost_estimate=pl.CostEstimate(flops=flops, transcendentals=0,
                                      bytes_accessed=bytes_accessed),
    )(x2d, US, Vc)

    return out2d.reshape(*lead_shape, d_ff)


if __name__ == "__main__":
    # Small shapes consistent with the module: d_model=32, d_ff=64, k=16.
    batch, seq, d_model, d_ff, k = 2, 8, 32, 64, 16

    key = jax.random.PRNGKey(0)
    kx, ku, ks, kv = jax.random.split(key, 4)

    x = jax.random.normal(kx, (batch, seq, d_model), dtype=jnp.float32)
    U = jax.random.normal(ku, (d_model, k), dtype=jnp.float32)
    S = jax.random.normal(ks, (k, k), dtype=jnp.float32)
    V = jax.random.normal(kv, (k, d_ff), dtype=jnp.float32)

    out = jax.block_until_ready(factorized_bert_intermediate(x, U, S, V))
    assert out.shape == (batch, seq, d_ff)
    assert out.dtype == x.dtype

    # Reference matched to the kernel's bf16-operand / f32-accumulate numerics.
    bf = lambda a: a.astype(jnp.bfloat16).astype(jnp.float32)
    US_ref = bf(U @ S)
    xu_ref = bf(x) @ US_ref
    ref_matched = bf(xu_ref) @ bf(V)
    assert jnp.allclose(out, ref_matched, atol=5e-1, rtol=3e-2), (
        "max abs err vs matched ref = "
        f"{float(jnp.max(jnp.abs(out - ref_matched)))}")

    # Loose sanity check against full-f32 module semantics
    # (bf16 compute => relaxed tolerance; values here are O(100)).
    ref_f32 = ((x @ U) @ S) @ V
    assert jnp.allclose(out, ref_f32, atol=3.0, rtol=1.5e-1), (
        "max abs err vs f32 ref = "
        f"{float(jnp.max(jnp.abs(out - ref_f32)))}")

    print("KERNEL_OK")
</pallas_src>

<mosaic_0001>
module attributes {stable_mosaic.version = 11 : i64} {
  func.func @_factorized_ffn_kernel(%arg0: i32, %arg1: i32, %arg2: memref<16x32xf32, #tpu.memory_space<vmem>>, %arg3: memref<32x128xbf16, #tpu.memory_space<vmem>>, %arg4: memref<128x64xbf16, #tpu.memory_space<vmem>>, %arg5: memref<16x64xf32, #tpu.memory_space<vmem>>) attributes {dimension_semantics = [#tpu.dimension_semantics<parallel>, #tpu.dimension_semantics<parallel>], iteration_bounds = array<i64: 1, 1>, scalar_prefetch = 0 : i64, scratch_operands = 0 : i64, tpu.core_type = #tpu.core_type<tc>, window_params = [{transform_indices = @transform_0, window_bounds = array<i64: 16, 32>}, {pipeline_mode = #tpu.pipeline_mode<synchronous>, transform_indices = @transform_1, window_bounds = array<i64: 32, 128>}, {transform_indices = @transform_2, window_bounds = array<i64: 128, 64>}, {transform_indices = @transform_3, window_bounds = array<i64: 16, 64>}]} {
    %c0 = arith.constant 0 : index
    %c0_0 = arith.constant 0 : index
    %0 = vector.load %arg2[%c0, %c0_0] : memref<16x32xf32, #tpu.memory_space<vmem>>, vector<16x32xf32>
    %1 = arith.truncf %0 : vector<16x32xf32> to vector<16x32xbf16>
    %c0_1 = arith.constant 0 : index
    %c0_2 = arith.constant 0 : index
    %2 = vector.load %arg3[%c0_1, %c0_2] : memref<32x128xbf16, #tpu.memory_space<vmem>>, vector<32x128xbf16>
    %cst = arith.constant dense<0.000000e+00> : vector<16x128xf32>
    %3 = tpu.matmul %1, %2, %cst {dimension_numbers = #tpu.dot_dimension_numbers<[1], [0], [0], [1], [0, 0, 1, 1], [], []>} : vector<16x32xbf16>, vector<32x128xbf16>, vector<16x128xf32> -> vector<16x128xf32>
    %4 = arith.truncf %3 : vector<16x128xf32> to vector<16x128xbf16>
    %c0_3 = arith.constant 0 : index
    %c0_4 = arith.constant 0 : index
    %5 = vector.load %arg4[%c0_3, %c0_4] : memref<128x64xbf16, #tpu.memory_space<vmem>>, vector<128x64xbf16>
    %cst_5 = arith.constant dense<0.000000e+00> : vector<16x64xf32>
    %6 = tpu.matmul %4, %5, %cst_5 {dimension_numbers = #tpu.dot_dimension_numbers<[1], [0], [0], [1], [0, 0, 1, 1], [], []>} : vector<16x128xbf16>, vector<128x64xbf16>, vector<16x64xf32> -> vector<16x64xf32>
    %c0_6 = arith.constant 0 : index
    %c0_7 = arith.constant 0 : index
    %7 = vector.load %arg5[%c0_6, %c0_7] : memref<16x64xf32, #tpu.memory_space<vmem>>, vector<16x64xf32>
    tpu.vector_store %arg5[%c0_6, %c0_7], %6 {strides = array<i32>} : memref<16x64xf32, #tpu.memory_space<vmem>>, vector<16x64xf32>,
    return
  }
  func.func @transform_0(%arg0: i32, %arg1: i32) -> (i32, i32) {
    %c0_i32 = arith.constant 0 : i32
    %c0_i32_0 = arith.constant 0 : i32
    return %arg0, %c0_i32 : i32, i32
  }
  func.func @transform_1(%arg0: i32, %arg1: i32) -> (i32, i32) {
    %c0_i32 = arith.constant 0 : i32
    %c0_i32_0 = arith.constant 0 : i32
    %c0_i32_1 = arith.constant 0 : i32
    return %c0_i32, %c0_i32_0 : i32, i32
  }
  func.func @transform_2(%arg0: i32, %arg1: i32) -> (i32, i32) {
    %c0_i32 = arith.constant 0 : i32
    %c0_i32_0 = arith.constant 0 : i32
    return %c0_i32, %arg1 : i32, i32
  }
  func.func @transform_3(%arg0: i32, %arg1: i32) -> (i32, i32) {
    %c0_i32 = arith.constant 0 : i32
    return %arg0, %arg1 : i32, i32
  }
}

</mosaic_0001>

<llo_original>
// kernel: factorized_bert_intermediate.1
$region0: #{factorized_bert_intermediate.1}
  #allocation0 [shape = 'u32[]', space=smem, size = 0x4, offset = 0x4, fixed_abs, tag = 'smem constant byte address 0x4 - core index']
  #allocation1 [shape = 'u32[144,128]{1,0:T(1,128)}', space=vmem, size = 0x12000, scoped, tag = 'internal scratch']
  %s0 = inlined_call_operand.vmem [shape: f32[16,32], index: 0, kind: input, shape index: {}]
  %s1 = inlined_call_operand.vmem [shape: bf16[32,128], index: 1, kind: input, shape index: {}]
  %s2 = inlined_call_operand.vmem [shape: bf16[128,64], index: 2, kind: input, shape index: {}]
  %s3 = inlined_call_operand.hbm [shape: f32[16,64], index: 3, kind: output, shape index: {}]
  %s4 = sld [smem:[#allocation0]]
  $region22: #{factorized_bert_intermediate.1} parent=0
    _
  %s6 = ssub.s32 1, %s4
  %s7 = scalar_select 0, %s6, %s4
  $region1: #{factorized_bert_intermediate.1} parent=0
    #allocation2 [shape = 'u8[8192]{0}', space=vmem, size = 0x2000, scoped, tag = 'output window, operand 0, single buffered']
    #allocation3 [shape = 's32[1]{0}', space=sflag, size = 0x4, scoped, tag = 'scoped memory for factorized_bert_intermediate.1']
    %8 = vsyncpa [#allocation3], 0
    // Predicated region
    $region2: #{factorized_bert_intermediate.1} parent=1 // pred_check
      _
    $region3: #{factorized_bert_intermediate.1} parent=1 // pred_check_branch
      %10 = sbr.rel (0) target = $region5
    $region4: #{factorized_bert_intermediate.1} parent=1 // pred_region
      _
    $region5: #{factorized_bert_intermediate.1} parent=1 // pred_fallthru
      _
    // Predicated region
    $region6: #{factorized_bert_intermediate.1} parent=1 // pred_check
      _
    $region7: #{factorized_bert_intermediate.1} parent=1 // pred_check_branch
      %12 = sbr.rel (0) target = $region9
    $region8: #{factorized_bert_intermediate.1} parent=1 // pred_region
      _
    $region9: #{factorized_bert_intermediate.1} parent=1 // pred_fallthru
      _
    // Predicated region
    $region10: #{factorized_bert_intermediate.1} parent=1 // pred_check
      _
    $region11: #{factorized_bert_intermediate.1} parent=1 // pred_check_branch
      %14 = sbr.rel (0) target = $region13
    $region12: #{factorized_bert_intermediate.1} parent=1 // pred_region
      _
    $region13: #{factorized_bert_intermediate.1} parent=1 // pred_fallthru
      _
    %v16 = vld [vmem:[%s0] sm:$0xff]
    %v17 = vld [vmem:[%s0 + $0x8] sm:$0xff]
    %v18 = vpack.c.bf16 %v17, %v16
    %v19 = vld [vmem:[%s1] sm:$0xf]
    %v20 = vld [vmem:[%s1 + $0x4] sm:$0xf]
    %v21 = vld [vmem:[%s1 + $0x8] sm:$0xf]
    %v22 = vld [vmem:[%s1 + $0xc] sm:$0xf]
    %v27 = vunpack.c.l.b16 %v19
    %v28 = vunpack.c.l.b16 %v20
    %v29 = vunpack.c.l.b16 %v21
    %v30 = vunpack.c.l.b16 %v22
    %v31 = vpack.c.b16 %v28, %v27
    %v32 = vpack.c.b16 %v30, %v29
    %vm35 = vcmask 261120
    %v37 = vsel %vm35, %v18, 0
    %39 = vmatprep.subr.bf16.mxu0 0
    %40 = vmatpush1.bf16.msra.mxu0 0
    %41 = vmatprep.subr.bf16.mxu0 0
    %42 = vmatpush1.bf16.msra.mxu0 0
    %43 = vmatprep.subr.bf16.mxu0 0
    %44 = vmatpush1.bf16.msra.mxu0 0
    %45 = vmatprep.subr.bf16.mxu0 0
    %46 = vmatpush1.bf16.msra.mxu0 0
    %47 = vmatprep.subr.bf16.mxu0 0
    %48 = vmatpush1.bf16.msra.mxu0 0
    %49 = vmatprep.subr.bf16.mxu0 0
    %50 = vmatpush1.bf16.msra.mxu0 0
    %51 = vmatprep.subr.bf16.mxu0 0
    %52 = vmatpush1.bf16.msra.mxu0 %v32
    %53 = vmatprep.subr.bf16.mxu0 0
    %54 = vmatpush1.bf16.msra.mxu0 %v31
    %55 = vmatprep.subr.bf16.mxu0 0
    %56 = vmatpush2.bf16.msra.mxu0 0
    %57 = vmatprep.subr.bf16.mxu0 0
    %58 = vmatpush2.bf16.msra.mxu0 0
    %59 = vmatprep.subr.bf16.mxu0 0
    %60 = vmatpush2.bf16.msra.mxu0 0
    %61 = vmatprep.subr.bf16.mxu0 0
    %62 = vmatpush2.bf16.msra.mxu0 0
    %63 = vmatprep.subr.bf16.mxu0 0
    %64 = vmatpush2.bf16.msra.mxu0 0
    %65 = vmatprep.subr.bf16.mxu0 0
    %66 = vmatpush2.bf16.msra.mxu0 0
    %67 = vmatprep.subr.bf16.mxu0 0
    %68 = vmatpush2.bf16.msra.mxu0 0
    %69 = vmatprep.subr.bf16.mxu0 0
    %70 = vmatpush2.bf16.msra.mxu0 0
    %71 = vmatprep.mubr.bf16.mxu0 0
    %72 = vmatmul.mubr.bf16.gmra.mxu0 %v37
    %v73 = vpop.f32.mrf.mxu0
    %v74 = vadd.f32 0.0, %v73
    %v75 = vpop.f32.mrf.mxu0
    %v76 = vpop.f32.mrf.mxu0
    %v77 = vadd.f32 0.0, %v76
    %v78 = vpop.f32.mrf.mxu0
    %79 = vdwg.mxu0
    %v80 = vpack.c.bf16 %v77, %v74
    %v81 = vld [vmem:[%s2] sm:$0xf]
    %v82 = vld [vmem:[%s2 + $0x4] sm:$0xf]
    %v83 = vld [vmem:[%s2 + $0x8] sm:$0xf]
    %v84 = vld [vmem:[%s2 + $0xc] sm:$0xf]
    %v85 = vld [vmem:[%s2 + $0x10] sm:$0xf]
    %v86 = vld [vmem:[%s2 + $0x14] sm:$0xf]
    %v87 = vld [vmem:[%s2 + $0x18] sm:$0xf]
    %v88 = vld [vmem:[%s2 + $0x1c] sm:$0xf]
    %v89 = vld [vmem:[%s2 + $0x20] sm:$0xf]
    %v90 = vld [vmem:[%s2 + $0x24] sm:$0xf]
    %v91 = vld [vmem:[%s2 + $0x28] sm:$0xf]
    %v92 = vld [vmem:[%s2 + $0x2c] sm:$0xf]
    %v93 = vld [vmem:[%s2 + $0x30] sm:$0xf]
    %v94 = vld [vmem:[%s2 + $0x34] sm:$0xf]
    %v95 = vld [vmem:[%s2 + $0x38] sm:$0xf]
    %v96 = vld [vmem:[%s2 + $0x3c] sm:$0xf]
    %v113 = vunpack.c.l.b16 %v81
    %v114 = vunpack.c.l.b16 %v82
    %v115 = vunpack.c.l.b16 %v83
    %v116 = vunpack.c.l.b16 %v84
    %v117 = vunpack.c.l.b16 %v85
    %v118 = vunpack.c.l.b16 %v86
    %v119 = vunpack.c.l.b16 %v87
    %v120 = vunpack.c.l.b16 %v88
    %v121 = vunpack.c.l.b16 %v89
    %v122 = vunpack.c.l.b16 %v90
    %v123 = vunpack.c.l.b16 %v91
    %v124 = vunpack.c.l.b16 %v92
    %v125 = vunpack.c.l.b16 %v93
    %v126 = vunpack.c.l.b16 %v94
    %v127 = vunpack.c.l.b16 %v95
    %v128 = vunpack.c.l.b16 %v96
    %v129 = vpack.c.b16 %v114, %v113
    %v130 = vpack.c.b16 %v116, %v115
    %v131 = vpack.c.b16 %v118, %v117
    %v132 = vpack.c.b16 %v120, %v119
    %v133 = vpack.c.b16 %v122, %v121
    %v134 = vpack.c.b16 %v124, %v123
    %v135 = vpack.c.b16 %v126, %v125
    %v136 = vpack.c.b16 %v128, %v127
    %145 = vmatprep.subr.bf16.mxu0 0
    %146 = vmatpush1.bf16.msra.mxu0 %v136
    %147 = vmatprep.subr.bf16.mxu0 0
    %148 = vmatpush1.bf16.msra.mxu0 %v135
    %149 = vmatprep.subr.bf16.mxu0 0
    %150 = vmatpush1.bf16.msra.mxu0 %v134
    %151 = vmatprep.subr.bf16.mxu0 0
    %152 = vmatpush1.bf16.msra.mxu0 %v133
    %153 = vmatprep.subr.bf16.mxu0 0
    %154 = vmatpush1.bf16.msra.mxu0 %v132
    %155 = vmatprep.subr.bf16.mxu0 0
    %156 = vmatpush1.bf16.msra.mxu0 %v131
    %157 = vmatprep.subr.bf16.mxu0 0
    %158 = vmatpush1.bf16.msra.mxu0 %v130
    %159 = vmatprep.subr.bf16.mxu0 0
    %160 = vmatpush1.bf16.msra.mxu0 %v129
    %161 = vmatprep.subr.bf16.mxu0 0
    %162 = vmatpush2.bf16.msra.mxu0 0
    %163 = vmatprep.subr.bf16.mxu0 0
    %164 = vmatpush2.bf16.msra.mxu0 0
    %165 = vmatprep.subr.bf16.mxu0 0
    %166 = vmatpush2.bf16.msra.mxu0 0
    %167 = vmatprep.subr.bf16.mxu0 0
    %168 = vmatpush2.bf16.msra.mxu0 0
    %169 = vmatprep.subr.bf16.mxu0 0
    %170 = vmatpush2.bf16.msra.mxu0 0
    %171 = vmatprep.subr.bf16.mxu0 0
    %172 = vmatpush2.bf16.msra.mxu0 0
    %173 = vmatprep.subr.bf16.mxu0 0
    %174 = vmatpush2.bf16.msra.mxu0 0
    %175 = vmatprep.subr.bf16.mxu0 0
    %176 = vmatpush2.bf16.msra.mxu0 0
    %177 = vmatprep.mubr.bf16.mxu0 0
    %178 = vmatmul.mubr.bf16.gmra.mxu0 %v80
    %v179 = vpop.f32.mrf.mxu0
    %v180 = vadd.f32 0.0, %v179
    %v181 = vpop.f32.mrf.mxu0
    %v182 = vpop.f32.mrf.mxu0
    %v183 = vadd.f32 0.0, %v182
    %v184 = vpop.f32.mrf.mxu0
    %185 = vdwg.mxu0
    %vm186 = vcmask 523264
    %187 = vst.msk [vmem:[#allocation2] sm:$0xff] %vm186, %v180
    %188 = vst.msk [vmem:[#allocation2 + $0x8] sm:$0xff] %vm186, %v183
    // Predicated region
    $region14: #{factorized_bert_intermediate.1} parent=1 // pred_check
      _
    $region15: #{factorized_bert_intermediate.1} parent=1 // pred_check_branch
      %190 = sbr.rel (0) target = $region17
    $region16: #{factorized_bert_intermediate.1} parent=1 // pred_region
      %s192 = ssub.s32 256, 256
      %193 = vsyncadd [#allocation3], %s192
      %s194 = sshll.u32 [#allocation2], 4
      %s195 = int_to_ptr.vmem [resolvable:$true] %s194
      %200 = dma.vmem_to_hbm [thread:$0]  %s195, 256, %s3, [#allocation3], 128, 128, 8
    $region17: #{factorized_bert_intermediate.1} parent=1 // pred_fallthru
      _
    // Predicated region
    $region18: #{factorized_bert_intermediate.1} parent=1 // pred_check
      _
    $region19: #{factorized_bert_intermediate.1} parent=1 // pred_check_branch
      %202 = sbr.rel (0) target = $region21
    $region20: #{factorized_bert_intermediate.1} parent=1 // pred_region
      %203 = dma.done [#allocation3], 256
    $region21: #{factorized_bert_intermediate.1} parent=1 // pred_fallthru
      _
    %204 = vsyncpa [#allocation3], 1

</llo_original>
